<compile_context>
chip_gen: v7x
topology: tpu7x:2x2x1
jax: 0.10.0
libtpu: 0.0.40
codegen_flags: <defaults>
</compile_context>

<pallas_src>
import jax
import jax.numpy as jnp
from jax.experimental import pallas as pl
from jax.experimental.pallas import tpu as pltpu

SUBLANE = 8  # sublane width of a vreg (second-to-last dim)


def _round_up(n: int, m: int) -> int:
    return ((n + m - 1) // m) * m


def prepare_params(w1, b1, w2, b2):
    """One-time parameter prep (hoisted off the per-call hot path).

    Weights are stored (in, out) = W_torch.T and cast to bf16 for the MXU;
    biases are kept in f32 (added to the f32 accumulator).
    """
    return (
        w1.astype(jnp.bfloat16),
        b1.reshape(1, -1).astype(jnp.float32),
        w2.astype(jnp.bfloat16),
        b2.reshape(1, -1).astype(jnp.float32),
    )


def odefunc_kernel(x_ref, w1_ref, b1_ref, w2_ref, b2_ref, o_ref):
    # hidden layer: Linear + Tanh (the Tanh inside `net`); bf16 MXU, f32 acc
    x = x_ref[...].astype(jnp.bfloat16)
    h = jnp.tanh(
        jnp.dot(x, w1_ref[...], preferred_element_type=jnp.float32) + b1_ref[...]
    )
    # output layer: Linear (bf16 operands, f32 acc)
    y = (
        jnp.dot(h.astype(jnp.bfloat16), w2_ref[...],
                preferred_element_type=jnp.float32)
        + b2_ref[...]
    )
    # self.nonlinear applied on top of self.net(x)
    o_ref[...] = jnp.tanh(y).astype(o_ref.dtype)


def ode_func_forward(t, x, params, *, block_batch: int = 512):
    """Pallas equivalent of ODEFunc.forward(t, x). `t` is unused (as in the module).

    x      : (B, H) float32
    params : output of prepare_params ->
             w1 (H, Hm) bf16, b1 (1, Hm) f32, w2 (Hm, Ho) bf16, b2 (1, Ho) f32
    """
    del t  # ODEFunc ignores t in its forward pass
    w1, b1, w2, b2 = params
    B, H = x.shape
    Hm = w1.shape[1]
    Ho = w2.shape[1]

    # Batch tile: multiple of 8 sublanes, sized so tiles divide B snugly
    # (no rounding of B up to a full tile).  Aim for >=2 tiles when B >= 16 so
    # the "parallel" grid axis can shard across v7x's two TensorCores.
    n_tiles_target = max(pl.cdiv(B, block_batch), 2 if B >= 2 * SUBLANE else 1)
    TB = _round_up(pl.cdiv(B, n_tiles_target), SUBLANE)
    grid = (pl.cdiv(B, TB),)

    cost = pl.CostEstimate(
        flops=2 * B * (H * Hm + Hm * Ho),
        transcendentals=B * (Hm + Ho),
        bytes_accessed=4 * (B * H + B * Ho + Hm + Ho) + 2 * (H * Hm + Hm * Ho),
    )

    return pl.pallas_call(
        odefunc_kernel,
        out_shape=jax.ShapeDtypeStruct((B, Ho), jnp.float32),
        grid_spec=pltpu.PrefetchScalarGridSpec(
            num_scalar_prefetch=0,
            grid=grid,
            in_specs=[
                # x: one batch tile per grid step (pipelined HBM->VMEM DMA);
                # last dim equals the full feature dim -> no lane padding needed
                pl.BlockSpec((TB, H), lambda i: (i, 0)),
                # weights / biases: constant index_map -> VMEM-resident, no re-DMA
                pl.BlockSpec((H, Hm), lambda i: (0, 0)),
                pl.BlockSpec((1, Hm), lambda i: (0, 0)),
                pl.BlockSpec((Hm, Ho), lambda i: (0, 0)),
                pl.BlockSpec((1, Ho), lambda i: (0, 0)),
            ],
            out_specs=pl.BlockSpec((TB, Ho), lambda i: (i, 0)),
        ),
        compiler_params=pltpu.CompilerParams(
            dimension_semantics=("parallel",),  # shard batch tiles across TCs (v7x)
        ),
        cost_estimate=cost,
    )(x, w1, b1, w2, b2)


if __name__ == "__main__":
    # Small shapes consistent with a latent-ODE func: batch=8, hidden=32, mid=64
    B, H, Hm = 8, 32, 64

    key = jax.random.PRNGKey(0)
    kx, k1, k2, k3, k4 = jax.random.split(key, 5)

    x = jax.random.normal(kx, (B, H), dtype=jnp.float32)
    # deterministic "init" of the ode_func_net parameters (stored as (in, out))
    w1 = jax.random.normal(k1, (H, Hm), dtype=jnp.float32) * 0.1
    b1 = jax.random.normal(k2, (1, Hm), dtype=jnp.float32) * 0.1
    w2 = jax.random.normal(k3, (Hm, H), dtype=jnp.float32) * 0.1
    b2 = jax.random.normal(k4, (1, H), dtype=jnp.float32) * 0.1

    # one-time parameter prep (bf16 weights for the MXU), off the hot path
    params = prepare_params(w1, b1, w2, b2)

    t = jnp.array(0.0, dtype=jnp.float32)  # ODE time, unused by the forward

    fwd = jax.jit(ode_func_forward)
    out = fwd(t, x, params)
    out = jax.block_until_ready(out)

    # reference check in plain JAX (f32); loose tolerance for bf16 MXU operands
    ref = jnp.tanh(jnp.tanh(x @ w1 + b1) @ w2 + b2)
    assert out.shape == (B, H), out.shape
    assert jnp.allclose(out, ref, atol=2e-2, rtol=2e-2), float(
        jnp.max(jnp.abs(out - ref))
    )

    print("KERNEL_OK")
</pallas_src>

<mosaic_0001>
module attributes {stable_mosaic.version = 11 : i64} {
  func.func @odefunc_kernel(%arg0: i32, %arg1: memref<8x32xf32, #tpu.memory_space<vmem>>, %arg2: memref<32x64xbf16, #tpu.memory_space<vmem>>, %arg3: memref<1x64xf32, #tpu.memory_space<vmem>>, %arg4: memref<64x32xbf16, #tpu.memory_space<vmem>>, %arg5: memref<1x32xf32, #tpu.memory_space<vmem>>, %arg6: memref<8x32xf32, #tpu.memory_space<vmem>>) attributes {dimension_semantics = [#tpu.dimension_semantics<parallel>], iteration_bounds = array<i64: 1>, scalar_prefetch = 0 : i64, scratch_operands = 0 : i64, tpu.core_type = #tpu.core_type<tc>, window_params = [{transform_indices = @transform_0, window_bounds = array<i64: 8, 32>}, {pipeline_mode = #tpu.pipeline_mode<synchronous>, transform_indices = @transform_1, window_bounds = array<i64: 32, 64>}, {pipeline_mode = #tpu.pipeline_mode<synchronous>, transform_indices = @transform_2, window_bounds = array<i64: 1, 64>}, {pipeline_mode = #tpu.pipeline_mode<synchronous>, transform_indices = @transform_3, window_bounds = array<i64: 64, 32>}, {pipeline_mode = #tpu.pipeline_mode<synchronous>, transform_indices = @transform_4, window_bounds = array<i64: 1, 32>}, {transform_indices = @transform_5, window_bounds = array<i64: 8, 32>}]} {
    %c0 = arith.constant 0 : index
    %c0_0 = arith.constant 0 : index
    %0 = vector.load %arg1[%c0, %c0_0] : memref<8x32xf32, #tpu.memory_space<vmem>>, vector<8x32xf32>
    %1 = arith.truncf %0 : vector<8x32xf32> to vector<8x32xbf16>
    %c0_1 = arith.constant 0 : index
    %c0_2 = arith.constant 0 : index
    %2 = vector.load %arg2[%c0_1, %c0_2] : memref<32x64xbf16, #tpu.memory_space<vmem>>, vector<32x64xbf16>
    %cst = arith.constant dense<0.000000e+00> : vector<8x64xf32>
    %3 = tpu.matmul %1, %2, %cst {dimension_numbers = #tpu.dot_dimension_numbers<[1], [0], [0], [1], [0, 0, 1, 1], [], []>} : vector<8x32xbf16>, vector<32x64xbf16>, vector<8x64xf32> -> vector<8x64xf32>
    %c0_3 = arith.constant 0 : index
    %c0_4 = arith.constant 0 : index
    %4 = vector.load %arg3[%c0_3, %c0_4] : memref<1x64xf32, #tpu.memory_space<vmem>>, vector<1x64xf32>
    %5 = vector.broadcast %4 : vector<1x64xf32> to vector<8x64xf32>
    %6 = arith.addf %3, %5 : vector<8x64xf32>
    %7 = math.tanh %6 : vector<8x64xf32>
    %8 = arith.truncf %7 : vector<8x64xf32> to vector<8x64xbf16>
    %c0_5 = arith.constant 0 : index
    %c0_6 = arith.constant 0 : index
    %9 = vector.load %arg4[%c0_5, %c0_6] : memref<64x32xbf16, #tpu.memory_space<vmem>>, vector<64x32xbf16>
    %cst_7 = arith.constant dense<0.000000e+00> : vector<8x32xf32>
    %10 = tpu.matmul %8, %9, %cst_7 {dimension_numbers = #tpu.dot_dimension_numbers<[1], [0], [0], [1], [0, 0, 1, 1], [], []>} : vector<8x64xbf16>, vector<64x32xbf16>, vector<8x32xf32> -> vector<8x32xf32>
    %c0_8 = arith.constant 0 : index
    %c0_9 = arith.constant 0 : index
    %11 = vector.load %arg5[%c0_8, %c0_9] : memref<1x32xf32, #tpu.memory_space<vmem>>, vector<1x32xf32>
    %12 = vector.broadcast %11 : vector<1x32xf32> to vector<8x32xf32>
    %13 = arith.addf %10, %12 : vector<8x32xf32>
    %14 = math.tanh %13 : vector<8x32xf32>
    %c0_10 = arith.constant 0 : index
    %c0_11 = arith.constant 0 : index
    %15 = vector.load %arg6[%c0_10, %c0_11] : memref<8x32xf32, #tpu.memory_space<vmem>>, vector<8x32xf32>
    tpu.vector_store %arg6[%c0_10, %c0_11], %14 {strides = array<i32>} : memref<8x32xf32, #tpu.memory_space<vmem>>, vector<8x32xf32>,
    return
  }
  func.func @transform_0(%arg0: i32) -> (i32, i32) {
    %c0_i32 = arith.constant 0 : i32
    %c0_i32_0 = arith.constant 0 : i32
    return %arg0, %c0_i32 : i32, i32
  }
  func.func @transform_1(%arg0: i32) -> (i32, i32) {
    %c0_i32 = arith.constant 0 : i32
    %c0_i32_0 = arith.constant 0 : i32
    %c0_i32_1 = arith.constant 0 : i32
    return %c0_i32, %c0_i32_0 : i32, i32
  }
  func.func @transform_2(%arg0: i32) -> (i32, i32) {
    %c0_i32 = arith.constant 0 : i32
    %c0_i32_0 = arith.constant 0 : i32
    %c0_i32_1 = arith.constant 0 : i32
    return %c0_i32, %c0_i32_0 : i32, i32
  }
  func.func @transform_3(%arg0: i32) -> (i32, i32) {
    %c0_i32 = arith.constant 0 : i32
    %c0_i32_0 = arith.constant 0 : i32
    %c0_i32_1 = arith.constant 0 : i32
    return %c0_i32, %c0_i32_0 : i32, i32
  }
  func.func @transform_4(%arg0: i32) -> (i32, i32) {
    %c0_i32 = arith.constant 0 : i32
    %c0_i32_0 = arith.constant 0 : i32
    %c0_i32_1 = arith.constant 0 : i32
    return %c0_i32, %c0_i32_0 : i32, i32
  }
  func.func @transform_5(%arg0: i32) -> (i32, i32) {
    %c0_i32 = arith.constant 0 : i32
    %c0_i32_0 = arith.constant 0 : i32
    return %arg0, %c0_i32 : i32, i32
  }
}

</mosaic_0001>

<llo_original>
// kernel: ode_func_forward.1
$region0: #{ode_func_forward.1}
  #allocation0 [shape = 'u32[]', space=smem, size = 0x4, offset = 0x4, fixed_abs, tag = 'smem constant byte address 0x4 - core index']
  #allocation1 [shape = 'u32[144,128]{1,0:T(1,128)}', space=vmem, size = 0x12000, scoped, tag = 'internal scratch']
  %s0 = inlined_call_operand.vmem [shape: f32[8,32], index: 0, kind: input, shape index: {}]
  %s1 = inlined_call_operand.vmem [shape: bf16[32,64], index: 1, kind: input, shape index: {}]
  %s2 = inlined_call_operand.vmem [shape: f32[1,64], index: 2, kind: input, shape index: {}]
  %s3 = inlined_call_operand.vmem [shape: bf16[64,32], index: 3, kind: input, shape index: {}]
  %s4 = inlined_call_operand.vmem [shape: f32[1,32], index: 4, kind: input, shape index: {}]
  %s5 = inlined_call_operand.hbm [shape: f32[8,32], index: 5, kind: output, shape index: {}]
  %s6 = sld [smem:[#allocation0]]
  $region30: #{ode_func_forward.1} parent=0
    _
  %s8 = ssub.s32 1, %s6
  %s9 = scalar_select 0, %s8, %s6
  $region1: #{ode_func_forward.1} parent=0
    #allocation2 [shape = 'u8[4096]{0}', space=vmem, size = 0x1000, scoped, tag = 'output window, operand 0, single buffered']
    #allocation3 [shape = 's32[1]{0}', space=sflag, size = 0x4, scoped, tag = 'scoped memory for ode_func_forward.1']
    %10 = vsyncpa [#allocation3], 0
    // Predicated region
    $region2: #{ode_func_forward.1} parent=1 // pred_check
      _
    $region3: #{ode_func_forward.1} parent=1 // pred_check_branch
      %12 = sbr.rel (0) target = $region5
    $region4: #{ode_func_forward.1} parent=1 // pred_region
      _
    $region5: #{ode_func_forward.1} parent=1 // pred_fallthru
      _
    // Predicated region
    $region6: #{ode_func_forward.1} parent=1 // pred_check
      _
    $region7: #{ode_func_forward.1} parent=1 // pred_check_branch
      %14 = sbr.rel (0) target = $region9
    $region8: #{ode_func_forward.1} parent=1 // pred_region
      _
    $region9: #{ode_func_forward.1} parent=1 // pred_fallthru
      _
    // Predicated region
    $region10: #{ode_func_forward.1} parent=1 // pred_check
      _
    $region11: #{ode_func_forward.1} parent=1 // pred_check_branch
      %16 = sbr.rel (0) target = $region13
    $region12: #{ode_func_forward.1} parent=1 // pred_region
      _
    $region13: #{ode_func_forward.1} parent=1 // pred_fallthru
      _
    // Predicated region
    $region14: #{ode_func_forward.1} parent=1 // pred_check
      _
    $region15: #{ode_func_forward.1} parent=1 // pred_check_branch
      %18 = sbr.rel (0) target = $region17
    $region16: #{ode_func_forward.1} parent=1 // pred_region
      _
    $region17: #{ode_func_forward.1} parent=1 // pred_fallthru
      _
    // Predicated region
    $region18: #{ode_func_forward.1} parent=1 // pred_check
      _
    $region19: #{ode_func_forward.1} parent=1 // pred_check_branch
      %20 = sbr.rel (0) target = $region21
    $region20: #{ode_func_forward.1} parent=1 // pred_region
      _
    $region21: #{ode_func_forward.1} parent=1 // pred_fallthru
      _
    %v22 = vld [vmem:[%s0] sm:$0xff]
    %v23 = vpack.c.bf16 %v22, %v22
    %v24 = vld [vmem:[%s1] sm:$0xf]
    %v25 = vld [vmem:[%s1 + $0x4] sm:$0xf]
    %v26 = vld [vmem:[%s1 + $0x8] sm:$0xf]
    %v27 = vld [vmem:[%s1 + $0xc] sm:$0xf]
    %v28 = vld [vmem:[%s2] sm:$0x1]
    %v30 = vlaneseq
    %v31 = vshrl.u32 %v30, 7
    %v32 = vsub.s32 0, %v31
    %v33 = vrot.slane %v28, %v32
    %v39 = vunpack.c.l.b16 %v24
    %v40 = vunpack.c.l.b16 %v25
    %v41 = vunpack.c.l.b16 %v26
    %v42 = vunpack.c.l.b16 %v27
    %v43 = vpack.c.b16 %v40, %v39
    %v44 = vpack.c.b16 %v42, %v41
    %vm47 = vcmask 261120
    %v49 = vsel %vm47, %v23, 0
    %51 = vmatprep.subr.bf16.mxu0 0
    %52 = vmatpush1.bf16.msra.mxu0 %v43
    %53 = vmatprep.subr.bf16.mxu0 0
    %54 = vmatpush1.bf16.msra.mxu0 %v44
    %55 = vmatprep.subr.bf16.mxu0 0
    %56 = vmatpush1.bf16.msra.mxu0 0
    %57 = vmatprep.subr.bf16.mxu0 0
    %58 = vmatpush1.bf16.msra.mxu0 0
    %59 = vmatprep.subr.bf16.mxu0 0
    %60 = vmatpush1.bf16.msra.mxu0 0
    %61 = vmatprep.subr.bf16.mxu0 0
    %62 = vmatpush1.bf16.msra.mxu0 0
    %63 = vmatprep.subr.bf16.mxu0 0
    %64 = vmatpush1.bf16.msra.mxu0 0
    %65 = vmatprep.subr.bf16.mxu0 0
    %66 = vmatpush1.bf16.msra.mxu0 0
    %67 = vmatprep.subr.bf16.mxu0 0
    %68 = vmatpush1.bf16.msra.mxu0 0
    %69 = vmatprep.subr.bf16.mxu0 0
    %70 = vmatpush1.bf16.msra.mxu0 0
    %71 = vmatprep.subr.bf16.mxu0 0
    %72 = vmatpush1.bf16.msra.mxu0 0
    %73 = vmatprep.subr.bf16.mxu0 0
    %74 = vmatpush1.bf16.msra.mxu0 0
    %75 = vmatprep.subr.bf16.mxu0 0
    %76 = vmatpush1.bf16.msra.mxu0 0
    %77 = vmatprep.subr.bf16.mxu0 0
    %78 = vmatpush1.bf16.msra.mxu0 0
    %79 = vmatprep.subr.bf16.mxu0 0
    %80 = vmatpush1.bf16.msra.mxu0 0
    %81 = vmatprep.subr.bf16.mxu0 0
    %82 = vmatpush1.bf16.msra.mxu0 0
    %83 = vmatprep.mubr.bf16.mxu0 0
    %84 = vmatmul.mubr.bf16.gmra.mrb[0].mxu0 %v49
    %v85 = vpop.f32.mrb[0].mxu0
    %v86 = vadd.f32 %v33, %v85
    %v87 = vpop.f32.mrb[0].mxu0
    %v88 = vpop.f32.mrb[0].mxu0
    %v89 = vpop.f32.mrb[0].mxu0
    %90 = vdwg.mxu0
    %v91 = vtanh.pop %v86
    %v92 = vpack.c.bf16 %v91, %v91
    %v93 = vld [vmem:[%s3] sm:$0xf]
    %v94 = vld [vmem:[%s3 + $0x4] sm:$0xf]
    %v95 = vld [vmem:[%s3 + $0x8] sm:$0xf]
    %v96 = vld [vmem:[%s3 + $0xc] sm:$0xf]
    %v97 = vld [vmem:[%s3 + $0x10] sm:$0xf]
    %v98 = vld [vmem:[%s3 + $0x14] sm:$0xf]
    %v99 = vld [vmem:[%s3 + $0x18] sm:$0xf]
    %v100 = vld [vmem:[%s3 + $0x1c] sm:$0xf]
    %v101 = vld [vmem:[%s4] sm:$0x1]
    %v103 = vlaneseq
    %v104 = vshrl.u32 %v103, 7
    %v105 = vsub.s32 0, %v104
    %v106 = vrot.slane %v101, %v105
    %v116 = vunpack.c.l.b16 %v93
    %v117 = vunpack.c.l.b16 %v94
    %v118 = vunpack.c.l.b16 %v95
    %v119 = vunpack.c.l.b16 %v96
    %v120 = vunpack.c.l.b16 %v97
    %v121 = vunpack.c.l.b16 %v98
    %v122 = vunpack.c.l.b16 %v99
    %v123 = vunpack.c.l.b16 %v100
    %v124 = vpack.c.b16 %v117, %v116
    %v125 = vpack.c.b16 %v119, %v118
    %v126 = vpack.c.b16 %v121, %v120
    %v127 = vpack.c.b16 %v123, %v122
    %vm132 = vcmask 523264
    %v134 = vsel %vm132, %v92, 0
    %136 = vmatprep.subr.bf16.mxu0 0
    %137 = vmatpush1.bf16.msra.mxu0 %v124
    %138 = vmatprep.subr.bf16.mxu0 0
    %139 = vmatpush1.bf16.msra.mxu0 %v125
    %140 = vmatprep.subr.bf16.mxu0 0
    %141 = vmatpush1.bf16.msra.mxu0 %v126
    %142 = vmatprep.subr.bf16.mxu0 0
    %143 = vmatpush1.bf16.msra.mxu0 %v127
    %144 = vmatprep.subr.bf16.mxu0 0
    %145 = vmatpush1.bf16.msra.mxu0 0
    %146 = vmatprep.subr.bf16.mxu0 0
    %147 = vmatpush1.bf16.msra.mxu0 0
    %148 = vmatprep.subr.bf16.mxu0 0
    %149 = vmatpush1.bf16.msra.mxu0 0
    %150 = vmatprep.subr.bf16.mxu0 0
    %151 = vmatpush1.bf16.msra.mxu0 0
    %152 = vmatprep.subr.bf16.mxu0 0
    %153 = vmatpush1.bf16.msra.mxu0 0
    %154 = vmatprep.subr.bf16.mxu0 0
    %155 = vmatpush1.bf16.msra.mxu0 0
    %156 = vmatprep.subr.bf16.mxu0 0
    %157 = vmatpush1.bf16.msra.mxu0 0
    %158 = vmatprep.subr.bf16.mxu0 0
    %159 = vmatpush1.bf16.msra.mxu0 0
    %160 = vmatprep.subr.bf16.mxu0 0
    %161 = vmatpush1.bf16.msra.mxu0 0
    %162 = vmatprep.subr.bf16.mxu0 0
    %163 = vmatpush1.bf16.msra.mxu0 0
    %164 = vmatprep.subr.bf16.mxu0 0
    %165 = vmatpush1.bf16.msra.mxu0 0
    %166 = vmatprep.subr.bf16.mxu0 0
    %167 = vmatpush1.bf16.msra.mxu0 0
    %168 = vmatprep.mubr.bf16.mxu0 0
    %169 = vmatmul.mubr.bf16.gmra.mrb[0].mxu0 %v134
    %v170 = vpop.f32.mrb[0].mxu0
    %v171 = vadd.f32 %v106, %v170
    %v172 = vpop.f32.mrb[0].mxu0
    %v173 = vpop.f32.mrb[0].mxu0
    %v174 = vpop.f32.mrb[0].mxu0
    %175 = vdwg.mxu0
    %v176 = vtanh.pop %v171
    %177 = vst.msk [vmem:[#allocation2] sm:$0xff] %vm47, %v176
    // Predicated region
    $region22: #{ode_func_forward.1} parent=1 // pred_check
      _
    $region23: #{ode_func_forward.1} parent=1 // pred_check_branch
      %179 = sbr.rel (0) target = $region25
    $region24: #{ode_func_forward.1} parent=1 // pred_region
      %s181 = ssub.s32 128, 128
      %182 = vsyncadd [#allocation3], %s181
      %s184 = sshll.u32 [#allocation2], 4
      %s185 = int_to_ptr.vmem [resolvable:$true] %s184
      %187 = dma.vmem_to_hbm [thread:$0]  %s185, 128, %s5, [#allocation3]
    $region25: #{ode_func_forward.1} parent=1 // pred_fallthru
      _
    // Predicated region
    $region26: #{ode_func_forward.1} parent=1 // pred_check
      _
    $region27: #{ode_func_forward.1} parent=1 // pred_check_branch
      %189 = sbr.rel (0) target = $region29
    $region28: #{ode_func_forward.1} parent=1 // pred_region
      %190 = dma.done [#allocation3], 128
    $region29: #{ode_func_forward.1} parent=1 // pred_fallthru
      _
    %191 = vsyncpa [#allocation3], 1

</llo_original>
